<compile_context>
chip_gen: v7x
topology: tpu7x:2x2x1
jax: 0.10.0
libtpu: 0.0.40
codegen_flags: <defaults>
</compile_context>

<pallas_src>
import functools

import jax
import jax.numpy as jnp
from jax.experimental import pallas as pl
from jax.experimental.pallas import tpu as pltpu


def _linproj_kernel(x_ref, w_ref, b_ref, o_ref):
    # x_ref: (tm, C) f32   w_ref: (C, W) bf16 (VMEM-resident)   b_ref: (1, W) f32
    # o_ref: (tm, W) bf16
    x_bf = x_ref[...].astype(w_ref.dtype)      # in-kernel cast; VPU work hides under MXU
    acc = jnp.dot(x_bf, w_ref[...], preferred_element_type=jnp.float32)
    o_ref[...] = (acc + b_ref[...]).astype(o_ref.dtype)


def _fused_proj(x2d, w_packed, b_packed, out_dtype, tm=256):
    """out = x2d @ w_packed + b_packed  ->  (M, W), W a multiple of 128."""
    M, C = x2d.shape
    Cw, W = w_packed.shape
    assert Cw == C and W % 128 == 0

    # tm=256 fills the 256-wide MXU on v6e/v7x and is a safe cross-gen default;
    # sweep up to 512-1024 on v6e if compute-bound.  Small M -> single full block.
    if M < tm:
        tm = M
    n_i = pl.cdiv(M, tm)   # ragged tail handled by Pallas output-block masking

    # VMEM budget (double-buffer everything + slack), clamped so it stays well
    # inside v7x's 64 MiB/TC for realistic C/inner.
    # TODO(synk): if the packed weight ever exceeds ~24 MiB, add a K (C)
    # reduction grid axis / column tiling instead of holding W fully resident.
    out_isz = jnp.dtype(out_dtype).itemsize
    vmem_bytes = 2 * (tm * C * 4 + C * W * 2 + W * 4 + tm * W * out_isz) + (2 << 20)
    vmem_limit = int(min(max(vmem_bytes, 32 << 20), 100 << 20))

    return pl.pallas_call(
        _linproj_kernel,
        out_shape=jax.ShapeDtypeStruct((M, W), out_dtype),
        grid_spec=pltpu.PrefetchScalarGridSpec(
            num_scalar_prefetch=0,
            grid=(n_i,),
            in_specs=[
                pl.BlockSpec((tm, C), lambda i: (i, 0)),
                # Constant block index -> weight/bias DMA'd once, held resident
                # in VMEM across all M tiles (no per-tile HBM re-streaming).
                pl.BlockSpec((C, W), lambda i: (0, 0)),
                pl.BlockSpec((1, W), lambda i: (0, 0)),
            ],
            out_specs=pl.BlockSpec((tm, W), lambda i: (i, 0)),
        ),
        compiler_params=pltpu.CompilerParams(
            dimension_semantics=("parallel",),   # shards M tiles across v7x's 2 TCs
            vmem_limit_bytes=vmem_limit),
    )(x2d, w_packed, b_packed)


def pack_qkv_weights(w_q, b_q, w_kv, b_kv, compute_dtype=jnp.bfloat16):
    """Pack nn.Linear params into (C, 3*inner_p) / (1, 3*inner_p).

    Each q/k/v slab is zero-padded to inner_p = round_up(inner, 128) so every
    slab starts on a lane-aligned, 128-multiple column offset.  Call once
    outside the per-step jit so the transpose/pad/cast is not paid per forward.
    """
    inner, C = w_q.shape
    inner_p = ((inner + 127) // 128) * 128
    ws = [w_q, w_kv[:inner], w_kv[inner:]]
    bs = [b_q, b_kv[:inner], b_kv[inner:]]
    w_cols, b_cols = [], []
    for w, b in zip(ws, bs):
        w_cols.append(jnp.pad(w.T, ((0, 0), (0, inner_p - inner))))   # (C, inner_p)
        b_cols.append(jnp.pad(b, (0, inner_p - inner)))               # (inner_p,)
    w_packed = jnp.concatenate(w_cols, axis=1).astype(compute_dtype)  # (C, 3*inner_p)
    b_packed = jnp.concatenate(b_cols).reshape(1, -1).astype(jnp.float32)
    return w_packed, b_packed


def linear_projection_pallas(x, w_packed, b_packed, heads, attn_kv=None,
                             out_dtype=jnp.bfloat16, tm=256):
    """Pallas implementation of LinearProjection.forward.

    x:        (B, N, C) float32
    w_packed: (C, 3*inner_p) bf16   b_packed: (1, 3*inner_p) f32
    returns q, k, v each of shape (B, heads, N, C // heads) in `out_dtype`.
    """
    B, N, C = x.shape
    W = w_packed.shape[-1]
    inner_p = W // 3
    inner = C   # module's reshape (C // heads) requires dim_head * heads == dim
    dh = C // heads

    x2d = x.reshape(B * N, C)   # stays f32; bf16 cast happens inside the kernel
    if attn_kv is None:
        out = _fused_proj(x2d, w_packed, b_packed, out_dtype, tm=tm)  # (B*N, 3*inner_p)
        q2d = out[:, :inner]
        k2d = out[:, inner_p:inner_p + inner]
        v2d = out[:, 2 * inner_p:2 * inner_p + inner]
    else:
        # Cross attention: q from x, k/v from attn_kv (module requires same B, N).
        kv2d = attn_kv.reshape(B * N, C)
        q2d = _fused_proj(x2d, w_packed[:, :inner_p], b_packed[:, :inner_p],
                          out_dtype, tm=tm)[:, :inner]
        kv = _fused_proj(kv2d, w_packed[:, inner_p:], b_packed[:, inner_p:],
                         out_dtype, tm=tm)
        k2d = kv[:, :inner]
        v2d = kv[:, inner_p:inner_p + inner]

    # TODO(synk): a downstream attention kernel could consume (B, N, heads, dh)
    # directly (a free reshape of the kernel output); the permute below is kept
    # only to match the module's (B, heads, N, dh) output contract.
    def split_heads(y2d):
        return y2d.reshape(B, N, heads, dh).transpose(0, 2, 1, 3)

    return split_heads(q2d), split_heads(k2d), split_heads(v2d)


def _init_linear(key, out_features, in_features):
    # Deterministic nn.Linear-style init: U(-1/sqrt(fan_in), 1/sqrt(fan_in))
    kw, kb = jax.random.split(key)
    bound = 1.0 / (in_features ** 0.5)
    w = jax.random.uniform(kw, (out_features, in_features), jnp.float32,
                           -bound, bound)
    b = jax.random.uniform(kb, (out_features,), jnp.float32, -bound, bound)
    return w, b


if __name__ == "__main__":
    # Small shapes: dim = heads * dim_head so the module's reshape is valid.
    B, N = 2, 8
    heads, dim_head = 4, 8
    dim = heads * dim_head            # C = 32
    inner_dim = heads * dim_head      # 32
    dh = dim // heads

    key = jax.random.PRNGKey(0)
    kx, kq, kkv, kc = jax.random.split(key, 4)
    x = jax.random.normal(kx, (B, N, dim), jnp.float32)
    w_q, b_q = _init_linear(kq, inner_dim, dim)
    w_kv, b_kv = _init_linear(kkv, 2 * inner_dim, dim)

    # Pack weights once, outside the jitted per-step path.
    w_packed, b_packed = pack_qkv_weights(w_q, b_q, w_kv, b_kv)

    fwd = jax.jit(functools.partial(linear_projection_pallas, heads=heads))
    q, k, v = fwd(x, w_packed, b_packed)
    jax.block_until_ready((q, k, v))

    # Reference in plain JAX f32 (same math as the PyTorch module).
    # bf16 MXU feed / bf16 outputs with f32 accumulate -> loosened tolerance.
    q_ref = (x @ w_q.T + b_q).reshape(B, N, heads, dh).transpose(0, 2, 1, 3)
    kv_ref = (x @ w_kv.T + b_kv).reshape(B, N, 2, heads, dh).transpose(2, 0, 3, 1, 4)
    assert q.shape == (B, heads, N, dh) and k.shape == q.shape and v.shape == q.shape
    assert jnp.allclose(q.astype(jnp.float32), q_ref, atol=5e-2, rtol=5e-2)
    assert jnp.allclose(k.astype(jnp.float32), kv_ref[0], atol=5e-2, rtol=5e-2)
    assert jnp.allclose(v.astype(jnp.float32), kv_ref[1], atol=5e-2, rtol=5e-2)

    # Cross-attention path (attn_kv != x) exercises the same kernel.
    attn_kv = jax.random.normal(kc, (B, N, dim), jnp.float32)
    q2, k2, v2 = fwd(x, w_packed, b_packed, attn_kv=attn_kv)
    jax.block_until_ready((q2, k2, v2))
    k2_ref = (attn_kv @ w_kv[:inner_dim].T + b_kv[:inner_dim]).reshape(
        B, N, heads, dh).transpose(0, 2, 1, 3)
    v2_ref = (attn_kv @ w_kv[inner_dim:].T + b_kv[inner_dim:]).reshape(
        B, N, heads, dh).transpose(0, 2, 1, 3)
    assert jnp.allclose(q2.astype(jnp.float32), q_ref, atol=5e-2, rtol=5e-2)
    assert jnp.allclose(k2.astype(jnp.float32), k2_ref, atol=5e-2, rtol=5e-2)
    assert jnp.allclose(v2.astype(jnp.float32), v2_ref, atol=5e-2, rtol=5e-2)

    print("KERNEL_OK")
</pallas_src>

<mosaic_0001>
module attributes {stable_mosaic.version = 11 : i64} {
  func.func @_linproj_kernel(%arg0: i32, %arg1: memref<16x32xf32, #tpu.memory_space<vmem>>, %arg2: memref<32x384xbf16, #tpu.memory_space<vmem>>, %arg3: memref<1x384xf32, #tpu.memory_space<vmem>>, %arg4: memref<16x384xbf16, #tpu.memory_space<vmem>>) attributes {dimension_semantics = [#tpu.dimension_semantics<parallel>], iteration_bounds = array<i64: 1>, scalar_prefetch = 0 : i64, scratch_operands = 0 : i64, tpu.core_type = #tpu.core_type<tc>, window_params = [{transform_indices = @transform_0, window_bounds = array<i64: 16, 32>}, {pipeline_mode = #tpu.pipeline_mode<synchronous>, transform_indices = @transform_1, window_bounds = array<i64: 32, 384>}, {pipeline_mode = #tpu.pipeline_mode<synchronous>, transform_indices = @transform_2, window_bounds = array<i64: 1, 384>}, {transform_indices = @transform_3, window_bounds = array<i64: 16, 384>}]} {
    %c0 = arith.constant 0 : index
    %c0_0 = arith.constant 0 : index
    %0 = vector.load %arg1[%c0, %c0_0] : memref<16x32xf32, #tpu.memory_space<vmem>>, vector<16x32xf32>
    %1 = arith.truncf %0 : vector<16x32xf32> to vector<16x32xbf16>
    %c0_1 = arith.constant 0 : index
    %c0_2 = arith.constant 0 : index
    %2 = vector.load %arg2[%c0_1, %c0_2] : memref<32x384xbf16, #tpu.memory_space<vmem>>, vector<32x384xbf16>
    %cst = arith.constant dense<0.000000e+00> : vector<16x384xf32>
    %3 = tpu.matmul %1, %2, %cst {dimension_numbers = #tpu.dot_dimension_numbers<[1], [0], [0], [1], [0, 0, 1, 1], [], []>} : vector<16x32xbf16>, vector<32x384xbf16>, vector<16x384xf32> -> vector<16x384xf32>
    %c0_3 = arith.constant 0 : index
    %c0_4 = arith.constant 0 : index
    %4 = vector.load %arg3[%c0_3, %c0_4] : memref<1x384xf32, #tpu.memory_space<vmem>>, vector<1x384xf32>
    %5 = vector.broadcast %4 : vector<1x384xf32> to vector<16x384xf32>
    %6 = arith.addf %3, %5 : vector<16x384xf32>
    %7 = arith.truncf %6 : vector<16x384xf32> to vector<16x384xbf16>
    %c0_5 = arith.constant 0 : index
    %c0_6 = arith.constant 0 : index
    %8 = vector.load %arg4[%c0_5, %c0_6] : memref<16x384xbf16, #tpu.memory_space<vmem>>, vector<16x384xbf16>
    tpu.vector_store %arg4[%c0_5, %c0_6], %7 {strides = array<i32>} : memref<16x384xbf16, #tpu.memory_space<vmem>>, vector<16x384xbf16>,
    return
  }
  func.func @transform_0(%arg0: i32) -> (i32, i32) {
    %c0_i32 = arith.constant 0 : i32
    %c0_i32_0 = arith.constant 0 : i32
    return %arg0, %c0_i32 : i32, i32
  }
  func.func @transform_1(%arg0: i32) -> (i32, i32) {
    %c0_i32 = arith.constant 0 : i32
    %c0_i32_0 = arith.constant 0 : i32
    %c0_i32_1 = arith.constant 0 : i32
    return %c0_i32, %c0_i32_0 : i32, i32
  }
  func.func @transform_2(%arg0: i32) -> (i32, i32) {
    %c0_i32 = arith.constant 0 : i32
    %c0_i32_0 = arith.constant 0 : i32
    %c0_i32_1 = arith.constant 0 : i32
    return %c0_i32, %c0_i32_0 : i32, i32
  }
  func.func @transform_3(%arg0: i32) -> (i32, i32) {
    %c0_i32 = arith.constant 0 : i32
    %c0_i32_0 = arith.constant 0 : i32
    return %arg0, %c0_i32 : i32, i32
  }
}

</mosaic_0001>

<llo_original>
// kernel: linear_projection_pallas.1
$region0: #{linear_projection_pallas.1}
  #allocation0 [shape = 'u32[]', space=smem, size = 0x4, offset = 0x4, fixed_abs, tag = 'smem constant byte address 0x4 - core index']
  #allocation1 [shape = 'u32[144,128]{1,0:T(1,128)}', space=vmem, size = 0x12000, scoped, tag = 'internal scratch']
  %s0 = inlined_call_operand.hbm [shape: f32[16,32], index: 0, kind: input, shape index: {}]
  %s1 = inlined_call_operand.hbm [shape: bf16[32,384], index: 1, kind: input, shape index: {}]
  %s2 = inlined_call_operand.vmem [shape: f32[1,384], index: 2, kind: input, shape index: {}]
  %s3 = inlined_call_operand.vmem [shape: bf16[16,384], index: 3, kind: output, shape index: {}]
  %s4 = sld [smem:[#allocation0]]
  $region30: #{linear_projection_pallas.1} parent=0
    _
  %s6 = ssub.s32 1, %s4
  %s7 = scalar_select 0, %s6, %s4
  $region1: #{linear_projection_pallas.1} parent=0
    #allocation2 [shape = 'u8[8192]{0}', space=vmem, size = 0x2000, scoped, tag = 'input window, operand 0, single buffered']
    #allocation3 [shape = 's32[1]{0}', space=sflag, size = 0x4, scoped, tag = 'scoped memory for linear_projection_pallas.1']
    #allocation4 [shape = 'u8[24576]{0}', space=vmem, size = 0x6000, scoped, tag = 'input window, operand 1, single buffered']
    #allocation5 [shape = 's32[1]{0}', space=sflag, size = 0x4, scoped, tag = 'scoped memory for linear_projection_pallas.1']
    %8 = vsyncpa [#allocation3], 0
    %9 = vsyncpa [#allocation5], 0
    // Predicated region
    $region2: #{linear_projection_pallas.1} parent=1 // pred_check
      _
    $region3: #{linear_projection_pallas.1} parent=1 // pred_check_branch
      %11 = sbr.rel (0) target = $region5
    $region4: #{linear_projection_pallas.1} parent=1 // pred_region
      %s13 = ssub.s32 256, 256
      %14 = vsyncadd [#allocation3], %s13
      %s15 = sshll.u32 [#allocation2], 4
      %s16 = int_to_ptr.vmem [resolvable:$true] %s15
      %21 = dma.hbm_to_vmem [thread:$0]  %s0, 256, %s16, [#allocation3], 128, 128, 8
    $region5: #{linear_projection_pallas.1} parent=1 // pred_fallthru
      _
    // Predicated region
    $region6: #{linear_projection_pallas.1} parent=1 // pred_check
      _
    $region7: #{linear_projection_pallas.1} parent=1 // pred_check_branch
      %23 = sbr.rel (0) target = $region9
    $region8: #{linear_projection_pallas.1} parent=1 // pred_region
      %s25 = ssub.s32 768, 768
      %26 = vsyncadd [#allocation5], %s25
      %s27 = sshll.u32 [#allocation4], 4
      %s28 = int_to_ptr.vmem [resolvable:$true] %s27
      %33 = dma.hbm_to_vmem [thread:$0]  %s1, 768, %s28, [#allocation5], 192, 192, 12
    $region9: #{linear_projection_pallas.1} parent=1 // pred_fallthru
      _
    // Predicated region
    $region10: #{linear_projection_pallas.1} parent=1 // pred_check
      _
    $region11: #{linear_projection_pallas.1} parent=1 // pred_check_branch
      %35 = sbr.rel (0) target = $region13
    $region12: #{linear_projection_pallas.1} parent=1 // pred_region
      _
    $region13: #{linear_projection_pallas.1} parent=1 // pred_fallthru
      _
    // Predicated region
    $region14: #{linear_projection_pallas.1} parent=1 // pred_check
      _
    $region15: #{linear_projection_pallas.1} parent=1 // pred_check_branch
      %37 = sbr.rel (0) target = $region17
    $region16: #{linear_projection_pallas.1} parent=1 // pred_region
      %38 = dma.done [#allocation3], 256
    $region17: #{linear_projection_pallas.1} parent=1 // pred_fallthru
      _
    // Predicated region
    $region18: #{linear_projection_pallas.1} parent=1 // pred_check
      _
    $region19: #{linear_projection_pallas.1} parent=1 // pred_check_branch
      %40 = sbr.rel (0) target = $region21
    $region20: #{linear_projection_pallas.1} parent=1 // pred_region
      %41 = dma.done [#allocation5], 768
    $region21: #{linear_projection_pallas.1} parent=1 // pred_fallthru
      _
    %v43 = vld [vmem:[#allocation2] sm:$0xff]
    %v44 = vld [vmem:[#allocation2 + $0x8] sm:$0xff]
    %v45 = vpack.c.bf16 %v44, %v43
    %v46 = vld [vmem:[#allocation4] sm:$0xff]
    %v47 = vld [vmem:[#allocation4 + $0x8] sm:$0xf]
    %v48 = vld [vmem:[#allocation4 + $0xc] sm:$0xff]
    %v49 = vld [vmem:[#allocation4 + $0x14] sm:$0xf]
    %v50 = vld [vmem:[#allocation4 + $0x18] sm:$0xff]
    %v51 = vld [vmem:[#allocation4 + $0x20] sm:$0xf]
    %v52 = vld [vmem:[#allocation4 + $0x24] sm:$0xff]
    %v53 = vld [vmem:[#allocation4 + $0x2c] sm:$0xf]
    %v54 = vld [vmem:[%s2] sm:$0x7]
    %v56 = vlaneseq
    %v57 = vshrl.u32 %v56, 7
    %v58 = vsub.s32 0, %v57
    %v59 = vrot.slane %v54, %v58
    %v60 = vlaneseq
    %v61 = vshrl.u32 %v60, 7
    %v62 = vsub.s32 1, %v61
    %v63 = vrot.slane %v54, %v62
    %v64 = vlaneseq
    %v65 = vshrl.u32 %v64, 7
    %v66 = vsub.s32 2, %v65
    %v67 = vrot.slane %v54, %v66
    %v79 = vunpack.c.l.b16 %v46
    %v80 = vunpack.c.h.b16 %v46
    %v81 = vunpack.c.l.b16 %v47
    %v82 = vunpack.c.l.b16 %v48
    %v83 = vunpack.c.h.b16 %v48
    %v84 = vunpack.c.l.b16 %v49
    %v85 = vunpack.c.l.b16 %v50
    %v86 = vunpack.c.h.b16 %v50
    %v87 = vunpack.c.l.b16 %v51
    %v88 = vunpack.c.l.b16 %v52
    %v89 = vunpack.c.h.b16 %v52
    %v90 = vunpack.c.l.b16 %v53
    %v91 = vpack.c.b16 %v82, %v79
    %v92 = vpack.c.b16 %v83, %v80
    %v93 = vpack.c.b16 %v84, %v81
    %v94 = vpack.c.b16 %v88, %v85
    %v95 = vpack.c.b16 %v89, %v86
    %v96 = vpack.c.b16 %v90, %v87
    %vm103 = vcmask 261120
    %v105 = vsel %vm103, %v45, 0
    %107 = vmatprep.subr.bf16.mxu0 %v92
    %108 = vmatpush1.bf16.msra.mxu0 %v91
    %109 = vmatprep.subr.bf16.mxu0 %v95
    %110 = vmatpush1.bf16.msra.mxu0 %v94
    %111 = vmatprep.subr.bf16.mxu0 0
    %112 = vmatpush1.bf16.msra.mxu0 0
    %113 = vmatprep.subr.bf16.mxu0 0
    %114 = vmatpush1.bf16.msra.mxu0 0
    %115 = vmatprep.subr.bf16.mxu0 0
    %116 = vmatpush1.bf16.msra.mxu0 0
    %117 = vmatprep.subr.bf16.mxu0 0
    %118 = vmatpush1.bf16.msra.mxu0 0
    %119 = vmatprep.subr.bf16.mxu0 0
    %120 = vmatpush1.bf16.msra.mxu0 0
    %121 = vmatprep.subr.bf16.mxu0 0
    %122 = vmatpush1.bf16.msra.mxu0 0
    %123 = vmatprep.subr.bf16.mxu0 0
    %124 = vmatpush1.bf16.msra.mxu0 0
    %125 = vmatprep.subr.bf16.mxu0 0
    %126 = vmatpush1.bf16.msra.mxu0 0
    %127 = vmatprep.subr.bf16.mxu0 0
    %128 = vmatpush1.bf16.msra.mxu0 0
    %129 = vmatprep.subr.bf16.mxu0 0
    %130 = vmatpush1.bf16.msra.mxu0 0
    %131 = vmatprep.subr.bf16.mxu0 0
    %132 = vmatpush1.bf16.msra.mxu0 0
    %133 = vmatprep.subr.bf16.mxu0 0
    %134 = vmatpush1.bf16.msra.mxu0 0
    %135 = vmatprep.subr.bf16.mxu0 0
    %136 = vmatpush1.bf16.msra.mxu0 0
    %137 = vmatprep.subr.bf16.mxu0 0
    %138 = vmatpush1.bf16.msra.mxu0 0
    %139 = vmatprep.mubr.bf16.mxu0 0
    %140 = vmatmul.mubr.bf16.gmra.mrb[0].mxu0 %v105
    %v141 = vpop.f32.mrb[0].mxu0
    %v142 = vadd.f32 %v59, %v141
    %v143 = vpop.f32.mrb[0].mxu0
    %v144 = vadd.f32 %v63, %v143
    %v145 = vpop.f32.mrb[0].mxu0
    %v146 = vadd.f32 %v59, %v145
    %v147 = vpop.f32.mrb[0].mxu0
    %v148 = vadd.f32 %v63, %v147
    %149 = vdwg.mxu0
    %150 = vmatprep.subr.bf16.mxu0 0
    %151 = vmatpush1.bf16.msra.mxu0 %v93
    %152 = vmatprep.subr.bf16.mxu0 0
    %153 = vmatpush1.bf16.msra.mxu0 %v96
    %154 = vmatprep.subr.bf16.mxu0 0
    %155 = vmatpush1.bf16.msra.mxu0 0
    %156 = vmatprep.subr.bf16.mxu0 0
    %157 = vmatpush1.bf16.msra.mxu0 0
    %158 = vmatprep.subr.bf16.mxu0 0
    %159 = vmatpush1.bf16.msra.mxu0 0
    %160 = vmatprep.subr.bf16.mxu0 0
    %161 = vmatpush1.bf16.msra.mxu0 0
    %162 = vmatprep.subr.bf16.mxu0 0
    %163 = vmatpush1.bf16.msra.mxu0 0
    %164 = vmatprep.subr.bf16.mxu0 0
    %165 = vmatpush1.bf16.msra.mxu0 0
    %166 = vmatprep.subr.bf16.mxu0 0
    %167 = vmatpush1.bf16.msra.mxu0 0
    %168 = vmatprep.subr.bf16.mxu0 0
    %169 = vmatpush1.bf16.msra.mxu0 0
    %170 = vmatprep.subr.bf16.mxu0 0
    %171 = vmatpush1.bf16.msra.mxu0 0
    %172 = vmatprep.subr.bf16.mxu0 0
    %173 = vmatpush1.bf16.msra.mxu0 0
    %174 = vmatprep.subr.bf16.mxu0 0
    %175 = vmatpush1.bf16.msra.mxu0 0
    %176 = vmatprep.subr.bf16.mxu0 0
    %177 = vmatpush1.bf16.msra.mxu0 0
    %178 = vmatprep.subr.bf16.mxu0 0
    %179 = vmatpush1.bf16.msra.mxu0 0
    %180 = vmatprep.subr.bf16.mxu0 0
    %181 = vmatpush1.bf16.msra.mxu0 0
    %182 = vmatprep.mubr.bf16.mxu0 0
    %183 = vmatmul.mubr.bf16.gmra.mrb[0].mxu0 %v105
    %v184 = vpop.f32.mrb[0].mxu0
    %v185 = vadd.f32 %v67, %v184
    %v186 = vpop.f32.mrb[0].mxu0
    %v187 = vpop.f32.mrb[0].mxu0
    %v188 = vadd.f32 %v67, %v187
    %v189 = vpop.f32.mrb[0].mxu0
    %190 = vdwg.mxu0
    %v191 = vpack.c.bf16 %v146, %v142
    %v192 = vpack.c.bf16 %v148, %v144
    %v193 = vpack.c.bf16 %v188, %v185
    %v197 = vunpack.c.l.b16 %v191
    %v198 = vunpack.c.l.b16 %v192
    %v199 = vunpack.c.l.b16 %v193
    %v200 = vunpack.c.h.b16 %v191
    %v201 = vunpack.c.h.b16 %v192
    %v202 = vunpack.c.h.b16 %v193
    %v203 = vpack.c.b16 %v198, %v197
    %v204 = vpack.c.b16 %v199, %v199
    %v205 = vpack.c.b16 %v201, %v200
    %v206 = vpack.c.b16 %v202, %v202
    %211 = vst [vmem:[%s3] sm:$0xff] %v203
    %212 = vst [vmem:[%s3 + $0x8] sm:$0xf] %v204
    %213 = vst [vmem:[%s3 + $0xc] sm:$0xff] %v205
    %214 = vst [vmem:[%s3 + $0x14] sm:$0xf] %v206
    // Predicated region
    $region22: #{linear_projection_pallas.1} parent=1 // pred_check
      _
    $region23: #{linear_projection_pallas.1} parent=1 // pred_check_branch
      %216 = sbr.rel (0) target = $region25
    $region24: #{linear_projection_pallas.1} parent=1 // pred_region
      _
    $region25: #{linear_projection_pallas.1} parent=1 // pred_fallthru
      _
    // Predicated region
    $region26: #{linear_projection_pallas.1} parent=1 // pred_check
      _
    $region27: #{linear_projection_pallas.1} parent=1 // pred_check_branch
      %218 = sbr.rel (0) target = $region29
    $region28: #{linear_projection_pallas.1} parent=1 // pred_region
      _
    $region29: #{linear_projection_pallas.1} parent=1 // pred_fallthru
      _
    %219 = vsyncpa [#allocation3], 1
    %220 = vsyncpa [#allocation5], 1

</llo_original>
